<compile_context>
chip_gen: v7x
topology: tpu7x:2x2x1
jax: 0.10.0
libtpu: 0.0.40
codegen_flags: <defaults>
</compile_context>

<pallas_src>
import math

import jax
import jax.numpy as jnp
from jax.experimental import pallas as pl
from jax.experimental.pallas import tpu as pltpu

ROT_EMBED_DIM = 32
TIME_EMBED_DIM = 32
HALF = TIME_EMBED_DIM // 2            # 16
HIDDEN_DIM = 128
OUT_DIM = 3
IN_PACK = 8                           # packed input lanes: [r0, r1, r2, t, 0, 0, 0, 0]
IN_PROJ = ROT_EMBED_DIM + HALF        # 48: cols 0..31 = rot@W1, cols 32..47 = t*freqs
LN_EPS = 1e-5


# ----------------------------------------------------------------------------- kernel
def scorenet_kernel(x_ref, w_in_ref, const_ref, w2_ref, w3_ref, w4_ref, out_ref):
    f32, bf16 = jnp.float32, jnp.bfloat16

    # --- fused input projection on the MXU: (TB,8) @ (8,48) ------------------
    h_all = jnp.dot(x_ref[...].astype(bf16), w_in_ref[...],
                    preferred_element_type=f32)                      # (TB, 48)
    h = h_all[:, :ROT_EMBED_DIM] + const_ref[0:1, :ROT_EMBED_DIM]    # + b1
    ang = h_all[:, ROT_EMBED_DIM:IN_PROJ]                            # t * freqs

    # --- LayerNorm(32) (stable variance) + affine + ReLU ----------------------
    mu = jnp.mean(h, axis=-1, keepdims=True)
    hc = h - mu
    var = jnp.mean(hc * hc, axis=-1, keepdims=True)
    rot_emb = jnp.maximum(
        hc * jax.lax.rsqrt(var + LN_EPS) * const_ref[1:2, :ROT_EMBED_DIM]
        + const_ref[2:3, :ROT_EMBED_DIM], 0.0)                       # (TB, 32)

    # --- sinusoidal time embedding (kept as split halves; EUP work) ----------
    s = jnp.sin(ang)
    c = jnp.cos(ang)

    # --- hidden layer 1: concat eliminated by splitting W2 over row ranges ---
    h1 = (jnp.dot(rot_emb.astype(bf16), w2_ref[0:ROT_EMBED_DIM, :],
                  preferred_element_type=f32)
          + jnp.dot(s.astype(bf16),
                    w2_ref[ROT_EMBED_DIM:ROT_EMBED_DIM + HALF, :],
                    preferred_element_type=f32)
          + jnp.dot(c.astype(bf16),
                    w2_ref[ROT_EMBED_DIM + HALF:ROT_EMBED_DIM + TIME_EMBED_DIM, :],
                    preferred_element_type=f32)
          + const_ref[3:4, :])                                       # + b2
    h1 = jnp.maximum(h1, 0.0)                                        # (TB, 128)

    # --- hidden layer 2 -------------------------------------------------------
    h2 = jnp.maximum(
        jnp.dot(h1.astype(bf16), w3_ref[...], preferred_element_type=f32)
        + const_ref[4:5, :], 0.0)                                    # (TB, 128)

    # --- output layer (w4 zero-padded to 128 cols) ----------------------------
    score = (jnp.dot(h2.astype(bf16), w4_ref[...], preferred_element_type=f32)
             + const_ref[5:6, :])                                    # (TB, 128)

    # Narrow store: only the 3 real output lanes go back to HBM.
    out_ref[...] = score[:, :OUT_DIM]                                # (TB, 3)


# ----------------------------------------------------------------------------- params
def make_params(key):
    """Deterministic Xavier-uniform-style init (weights [in, out], zero biases)."""
    def xavier(k, fan_in, fan_out):
        limit = math.sqrt(6.0 / (fan_in + fan_out))
        return jax.random.uniform(k, (fan_in, fan_out), jnp.float32,
                                  minval=-limit, maxval=limit)

    k1, k2, k3, k4 = jax.random.split(key, 4)
    params = dict(
        w1=xavier(k1, 3, ROT_EMBED_DIM),
        b1=jnp.zeros((1, ROT_EMBED_DIM), jnp.float32),
        ln_g=jnp.ones((1, ROT_EMBED_DIM), jnp.float32),
        ln_b=jnp.zeros((1, ROT_EMBED_DIM), jnp.float32),
        w2=xavier(k2, ROT_EMBED_DIM + TIME_EMBED_DIM, HIDDEN_DIM),
        b2=jnp.zeros((1, HIDDEN_DIM), jnp.float32),
        w3=xavier(k3, HIDDEN_DIM, HIDDEN_DIM),
        b3=jnp.zeros((1, HIDDEN_DIM), jnp.float32),
        w4=xavier(k4, HIDDEN_DIM, OUT_DIM),
        b4=jnp.zeros((1, OUT_DIM), jnp.float32),
    )
    # sinusoidal embedder frequencies: exp(-log(10000) * i / (half - 1))
    scale = math.log(10000.0) / (HALF - 1)
    params["freqs"] = jnp.exp(
        -scale * jnp.arange(HALF, dtype=jnp.float32)).reshape(1, HALF)
    return params


def prepare_kernel_params(params):
    """Pack / pad / cast master fp32 params into kernel-layout arrays."""
    bf16 = jnp.bfloat16

    # Packed input-projection weight (8, 48):
    #   rows 0..2, cols 0..31  -> W1 (3, 32)
    #   row  3,    cols 32..47 -> freqs (16,)
    w_in = jnp.zeros((IN_PACK, IN_PROJ), jnp.float32)
    w_in = w_in.at[0:3, 0:ROT_EMBED_DIM].set(params["w1"])
    w_in = w_in.at[3, ROT_EMBED_DIM:IN_PROJ].set(params["freqs"].reshape(HALF))

    # Constants slab (8, 128): rows = b1, ln_g, ln_b, b2, b3, b4(padded), 0, 0
    consts = jnp.zeros((8, HIDDEN_DIM), jnp.float32)
    consts = consts.at[0, :ROT_EMBED_DIM].set(params["b1"].reshape(-1))
    consts = consts.at[1, :ROT_EMBED_DIM].set(params["ln_g"].reshape(-1))
    consts = consts.at[2, :ROT_EMBED_DIM].set(params["ln_b"].reshape(-1))
    consts = consts.at[3, :].set(params["b2"].reshape(-1))
    consts = consts.at[4, :].set(params["b3"].reshape(-1))
    consts = consts.at[5, :OUT_DIM].set(params["b4"].reshape(-1))

    w4p = jnp.zeros((HIDDEN_DIM, HIDDEN_DIM), jnp.float32)
    w4p = w4p.at[:, :OUT_DIM].set(params["w4"])

    return dict(
        w_in=w_in.astype(bf16),                      # (8, 48)   bf16
        consts=consts,                               # (8, 128)  f32
        w2=params["w2"].astype(bf16),                # (64, 128) bf16
        w3=params["w3"].astype(bf16),                # (128,128) bf16
        w4=w4p.astype(bf16),                         # (128,128) bf16 (padded cols)
    )


# ----------------------------------------------------------------------------- wrapper
def _round_up(x, m):
    return ((x + m - 1) // m) * m


def _choose_tb(batch, block_b):
    """Batch tile: multiple of 8; for large B keep >= 2 grid steps (v7x 2-TC)."""
    target = max(_round_up(-(-batch // 2), 8), 8)    # ceil(B/2) rounded up to 8
    tb = min(block_b, target)
    return max(_round_up(tb, 8), 8)


def scorenet_forward(rot_vec, t, params, *, block_b=2048):
    """rot_vec: (B, 3) float32, t: (B,) float32 -> (B, 3) float32."""
    B = rot_vec.shape[0]
    kp = prepare_kernel_params(params)

    TB = _choose_tb(B, block_b)
    B_pad = _round_up(B, TB)
    grid = (B_pad // TB,)

    # Packed activations: lanes 0..2 = rot_vec, lane 3 = t, lanes 4..7 = 0.
    xin = jnp.zeros((B_pad, IN_PACK), jnp.float32)
    xin = xin.at[:B, 0:3].set(rot_vec.astype(jnp.float32))
    xin = xin.at[:B, 3].set(t.astype(jnp.float32))

    args = [xin, kp["w_in"], kp["consts"], kp["w2"], kp["w3"], kp["w4"]]

    in_specs = [
        pl.BlockSpec((TB, IN_PACK), lambda i: (i, 0)),               # activations
        pl.BlockSpec(kp["w_in"].shape, lambda i: (0, 0)),            # resident weights
        pl.BlockSpec(kp["consts"].shape, lambda i: (0, 0)),
        pl.BlockSpec(kp["w2"].shape, lambda i: (0, 0)),
        pl.BlockSpec(kp["w3"].shape, lambda i: (0, 0)),
        pl.BlockSpec(kp["w4"].shape, lambda i: (0, 0)),
    ]
    out_spec = pl.BlockSpec((TB, OUT_DIM), lambda i: (i, 0))

    flops = 2 * B_pad * (IN_PACK * IN_PROJ
                         + (ROT_EMBED_DIM + TIME_EMBED_DIM) * HIDDEN_DIM
                         + HIDDEN_DIM * HIDDEN_DIM
                         + HIDDEN_DIM * HIDDEN_DIM)
    transcendentals = B_pad * (TIME_EMBED_DIM + 1)                   # sin + cos + rsqrt
    bytes_accessed = (sum(int(a.size) * a.dtype.itemsize for a in args)
                      + B_pad * OUT_DIM * 4)

    cp_kwargs = dict(dimension_semantics=("parallel",))
    if TB >= 2048:
        cp_kwargs["vmem_limit_bytes"] = 48 * 1024 * 1024

    out = pl.pallas_call(
        scorenet_kernel,
        out_shape=jax.ShapeDtypeStruct((B_pad, OUT_DIM), jnp.float32),
        grid=grid,
        in_specs=in_specs,
        out_specs=out_spec,
        compiler_params=pltpu.CompilerParams(**cp_kwargs),
        cost_estimate=pl.CostEstimate(
            flops=int(flops),
            transcendentals=int(transcendentals),
            bytes_accessed=int(bytes_accessed)),
    )(*args)

    return out[:B]


# ----------------------------------------------------------------------------- refs
def scorenet_reference_matched(rot_vec, t, params):
    """Pure-JAX reference with the SAME packing / bf16-at-MXU math as the kernel."""
    f32, bf16 = jnp.float32, jnp.bfloat16
    kp = prepare_kernel_params(params)
    B = rot_vec.shape[0]

    xin = jnp.zeros((B, IN_PACK), f32)
    xin = xin.at[:, 0:3].set(rot_vec).at[:, 3].set(t)

    h_all = jnp.dot(xin.astype(bf16), kp["w_in"], preferred_element_type=f32)
    h = h_all[:, :ROT_EMBED_DIM] + kp["consts"][0:1, :ROT_EMBED_DIM]
    ang = h_all[:, ROT_EMBED_DIM:IN_PROJ]

    mu = h.mean(-1, keepdims=True)
    hc = h - mu
    var = (hc * hc).mean(-1, keepdims=True)
    rot_emb = jnp.maximum(
        hc * jax.lax.rsqrt(var + LN_EPS) * kp["consts"][1:2, :ROT_EMBED_DIM]
        + kp["consts"][2:3, :ROT_EMBED_DIM], 0.0)

    s, c = jnp.sin(ang), jnp.cos(ang)
    h1 = (jnp.dot(rot_emb.astype(bf16), kp["w2"][0:ROT_EMBED_DIM],
                  preferred_element_type=f32)
          + jnp.dot(s.astype(bf16), kp["w2"][ROT_EMBED_DIM:ROT_EMBED_DIM + HALF],
                    preferred_element_type=f32)
          + jnp.dot(c.astype(bf16), kp["w2"][ROT_EMBED_DIM + HALF:],
                    preferred_element_type=f32)
          + kp["consts"][3:4, :])
    h1 = jnp.maximum(h1, 0.0)
    h2 = jnp.maximum(
        jnp.dot(h1.astype(bf16), kp["w3"], preferred_element_type=f32)
        + kp["consts"][4:5, :], 0.0)
    score = (jnp.dot(h2.astype(bf16), kp["w4"], preferred_element_type=f32)
             + kp["consts"][5:6, :])
    return score[:, :OUT_DIM]


def scorenet_reference_fp32(rot_vec, t, params):
    """Pure-fp32 reference of the original module semantics (loose sanity check)."""
    h = rot_vec @ params["w1"] + params["b1"]
    mu = h.mean(-1, keepdims=True)
    var = ((h - mu) ** 2).mean(-1, keepdims=True)
    h = (h - mu) / jnp.sqrt(var + LN_EPS) * params["ln_g"] + params["ln_b"]
    rot_emb = jnp.maximum(h, 0.0)
    ang = t[:, None] * params["freqs"]
    t_emb = jnp.concatenate([jnp.sin(ang), jnp.cos(ang)], axis=-1)
    x = jnp.concatenate([rot_emb, t_emb], axis=-1)
    h1 = jnp.maximum(x @ params["w2"] + params["b2"], 0.0)
    h2 = jnp.maximum(h1 @ params["w3"] + params["b3"], 0.0)
    return h2 @ params["w4"] + params["b4"]


# ----------------------------------------------------------------------------- main
if __name__ == "__main__":
    key = jax.random.PRNGKey(0)
    k_params, k_rot, k_t = jax.random.split(key, 3)

    B = 8
    params = make_params(k_params)
    rot_vec = jax.random.normal(k_rot, (B, 3), jnp.float32)
    t = jax.random.uniform(k_t, (B,), jnp.float32)

    out = scorenet_forward(rot_vec, t, params)
    out = jax.block_until_ready(out)
    assert out.shape == (B, OUT_DIM)

    # Tight check against a precision-matched (bf16-at-MXU, same packing) reference.
    ref_m = scorenet_reference_matched(rot_vec, t, params)
    assert jnp.allclose(out, ref_m, atol=5e-3, rtol=5e-3), \
        "mismatch vs bf16-matched reference"

    # Loose sanity check against the true fp32 module semantics.
    ref_f = scorenet_reference_fp32(rot_vec, t, params)
    assert jnp.allclose(out, ref_f, atol=0.25, rtol=0.05), \
        "mismatch vs fp32 reference"

    print("KERNEL_OK")
</pallas_src>

<mosaic_0001>
module attributes {stable_mosaic.version = 11 : i64} {
  func.func @scorenet_kernel(%arg0: i32, %arg1: memref<8x8xf32, #tpu.memory_space<vmem>>, %arg2: memref<8x48xbf16, #tpu.memory_space<vmem>>, %arg3: memref<8x128xf32, #tpu.memory_space<vmem>>, %arg4: memref<64x128xbf16, #tpu.memory_space<vmem>>, %arg5: memref<128x128xbf16, #tpu.memory_space<vmem>>, %arg6: memref<128x128xbf16, #tpu.memory_space<vmem>>, %arg7: memref<8x3xf32, #tpu.memory_space<vmem>>) attributes {dimension_semantics = [#tpu.dimension_semantics<parallel>], iteration_bounds = array<i64: 1>, scalar_prefetch = 0 : i64, scratch_operands = 0 : i64, tpu.core_type = #tpu.core_type<tc>, window_params = [{transform_indices = @transform_0, window_bounds = array<i64: 8, 8>}, {pipeline_mode = #tpu.pipeline_mode<synchronous>, transform_indices = @transform_1, window_bounds = array<i64: 8, 48>}, {pipeline_mode = #tpu.pipeline_mode<synchronous>, transform_indices = @transform_2, window_bounds = array<i64: 8, 128>}, {pipeline_mode = #tpu.pipeline_mode<synchronous>, transform_indices = @transform_3, window_bounds = array<i64: 64, 128>}, {pipeline_mode = #tpu.pipeline_mode<synchronous>, transform_indices = @transform_4, window_bounds = array<i64: 128, 128>}, {pipeline_mode = #tpu.pipeline_mode<synchronous>, transform_indices = @transform_5, window_bounds = array<i64: 128, 128>}, {transform_indices = @transform_6, window_bounds = array<i64: 8, 3>}]} {
    %c0 = arith.constant 0 : index
    %c0_0 = arith.constant 0 : index
    %0 = vector.load %arg1[%c0, %c0_0] : memref<8x8xf32, #tpu.memory_space<vmem>>, vector<8x8xf32>
    %1 = arith.truncf %0 : vector<8x8xf32> to vector<8x8xbf16>
    %c0_1 = arith.constant 0 : index
    %c0_2 = arith.constant 0 : index
    %2 = vector.load %arg2[%c0_1, %c0_2] : memref<8x48xbf16, #tpu.memory_space<vmem>>, vector<8x48xbf16>
    %cst = arith.constant dense<0.000000e+00> : vector<8x48xf32>
    %3 = tpu.matmul %1, %2, %cst {dimension_numbers = #tpu.dot_dimension_numbers<[1], [0], [0], [1], [0, 0, 1, 1], [], []>} : vector<8x8xbf16>, vector<8x48xbf16>, vector<8x48xf32> -> vector<8x48xf32>
    %4 = vector.extract_strided_slice %3 {offsets = [0, 0], sizes = [8, 32], strides = [1, 1]} : vector<8x48xf32> to vector<8x32xf32>
    %c0_3 = arith.constant 0 : index
    %c0_4 = arith.constant 0 : index
    %5 = vector.load %arg3[%c0_3, %c0_4] : memref<8x128xf32, #tpu.memory_space<vmem>>, vector<1x32xf32>
    %6 = vector.broadcast %5 : vector<1x32xf32> to vector<8x32xf32>
    %7 = arith.addf %4, %6 : vector<8x32xf32>
    %8 = vector.extract_strided_slice %3 {offsets = [0, 32], sizes = [8, 16], strides = [1, 1]} : vector<8x48xf32> to vector<8x16xf32>
    %cst_5 = arith.constant dense<0.000000e+00> : vector<8xf32>
    %9 = vector.multi_reduction <add>, %7, %cst_5 [1] : vector<8x32xf32> to vector<8xf32>
    %10 = vector.shape_cast %9 : vector<8xf32> to vector<8x1xf32>
    %cst_6 = arith.constant 3.200000e+01 : f32
    %11 = vector.broadcast %cst_6 : f32 to vector<8x1xf32>
    %12 = arith.divf %10, %11 : vector<8x1xf32>
    %13 = vector.broadcast %12 : vector<8x1xf32> to vector<8x32xf32>
    %14 = arith.subf %7, %13 : vector<8x32xf32>
    %15 = arith.mulf %14, %14 : vector<8x32xf32>
    %cst_7 = arith.constant dense<0.000000e+00> : vector<8xf32>
    %16 = vector.multi_reduction <add>, %15, %cst_7 [1] : vector<8x32xf32> to vector<8xf32>
    %17 = vector.shape_cast %16 : vector<8xf32> to vector<8x1xf32>
    %cst_8 = arith.constant 3.200000e+01 : f32
    %18 = vector.broadcast %cst_8 : f32 to vector<8x1xf32>
    %19 = arith.divf %17, %18 : vector<8x1xf32>
    %cst_9 = arith.constant 9.99999974E-6 : f32
    %20 = vector.broadcast %cst_9 : f32 to vector<8x1xf32>
    %21 = arith.addf %19, %20 : vector<8x1xf32>
    %22 = math.rsqrt %21 : vector<8x1xf32>
    %23 = vector.broadcast %22 : vector<8x1xf32> to vector<8x32xf32>
    %24 = arith.mulf %14, %23 : vector<8x32xf32>
    %c1 = arith.constant 1 : index
    %c0_10 = arith.constant 0 : index
    %25 = vector.load %arg3[%c1, %c0_10] : memref<8x128xf32, #tpu.memory_space<vmem>>, vector<1x32xf32>
    %26 = vector.broadcast %25 : vector<1x32xf32> to vector<8x32xf32>
    %27 = arith.mulf %24, %26 : vector<8x32xf32>
    %c2 = arith.constant 2 : index
    %c0_11 = arith.constant 0 : index
    %28 = vector.load %arg3[%c2, %c0_11] : memref<8x128xf32, #tpu.memory_space<vmem>>, vector<1x32xf32>
    %29 = vector.broadcast %28 : vector<1x32xf32> to vector<8x32xf32>
    %30 = arith.addf %27, %29 : vector<8x32xf32>
    %cst_12 = arith.constant 0.000000e+00 : f32
    %31 = vector.broadcast %cst_12 : f32 to vector<8x32xf32>
    %32 = arith.maximumf %30, %31 : vector<8x32xf32>
    %33 = math.sin %8 : vector<8x16xf32>
    %34 = math.cos %8 : vector<8x16xf32>
    %35 = arith.truncf %32 : vector<8x32xf32> to vector<8x32xbf16>
    %c0_13 = arith.constant 0 : index
    %c0_14 = arith.constant 0 : index
    %36 = vector.load %arg4[%c0_13, %c0_14] : memref<64x128xbf16, #tpu.memory_space<vmem>>, vector<32x128xbf16>
    %cst_15 = arith.constant dense<0.000000e+00> : vector<8x128xf32>
    %37 = tpu.matmul %35, %36, %cst_15 {dimension_numbers = #tpu.dot_dimension_numbers<[1], [0], [0], [1], [0, 0, 1, 1], [], []>} : vector<8x32xbf16>, vector<32x128xbf16>, vector<8x128xf32> -> vector<8x128xf32>
    %38 = arith.truncf %33 : vector<8x16xf32> to vector<8x16xbf16>
    %c32 = arith.constant 32 : index
    %c0_16 = arith.constant 0 : index
    %39 = vector.load %arg4[%c32, %c0_16] : memref<64x128xbf16, #tpu.memory_space<vmem>>, vector<16x128xbf16>
    %cst_17 = arith.constant dense<0.000000e+00> : vector<8x128xf32>
    %40 = tpu.matmul %38, %39, %cst_17 {dimension_numbers = #tpu.dot_dimension_numbers<[1], [0], [0], [1], [0, 0, 1, 1], [], []>} : vector<8x16xbf16>, vector<16x128xbf16>, vector<8x128xf32> -> vector<8x128xf32>
    %41 = arith.addf %37, %40 : vector<8x128xf32>
    %42 = arith.truncf %34 : vector<8x16xf32> to vector<8x16xbf16>
    %c48 = arith.constant 48 : index
    %c0_18 = arith.constant 0 : index
    %43 = vector.load %arg4[%c48, %c0_18] : memref<64x128xbf16, #tpu.memory_space<vmem>>, vector<16x128xbf16>
    %cst_19 = arith.constant dense<0.000000e+00> : vector<8x128xf32>
    %44 = tpu.matmul %42, %43, %cst_19 {dimension_numbers = #tpu.dot_dimension_numbers<[1], [0], [0], [1], [0, 0, 1, 1], [], []>} : vector<8x16xbf16>, vector<16x128xbf16>, vector<8x128xf32> -> vector<8x128xf32>
    %45 = arith.addf %41, %44 : vector<8x128xf32>
    %c3 = arith.constant 3 : index
    %c0_20 = arith.constant 0 : index
    %46 = vector.load %arg3[%c3, %c0_20] : memref<8x128xf32, #tpu.memory_space<vmem>>, vector<1x128xf32>
    %47 = vector.broadcast %46 : vector<1x128xf32> to vector<8x128xf32>
    %48 = arith.addf %45, %47 : vector<8x128xf32>
    %cst_21 = arith.constant 0.000000e+00 : f32
    %49 = vector.broadcast %cst_21 : f32 to vector<8x128xf32>
    %50 = arith.maximumf %48, %49 : vector<8x128xf32>
    %51 = arith.truncf %50 : vector<8x128xf32> to vector<8x128xbf16>
    %c0_22 = arith.constant 0 : index
    %c0_23 = arith.constant 0 : index
    %52 = vector.load %arg5[%c0_22, %c0_23] : memref<128x128xbf16, #tpu.memory_space<vmem>>, vector<128x128xbf16>
    %cst_24 = arith.constant dense<0.000000e+00> : vector<8x128xf32>
    %53 = tpu.matmul %51, %52, %cst_24 {dimension_numbers = #tpu.dot_dimension_numbers<[1], [0], [0], [1], [0, 0, 1, 1], [], []>} : vector<8x128xbf16>, vector<128x128xbf16>, vector<8x128xf32> -> vector<8x128xf32>
    %c4 = arith.constant 4 : index
    %c0_25 = arith.constant 0 : index
    %54 = vector.load %arg3[%c4, %c0_25] : memref<8x128xf32, #tpu.memory_space<vmem>>, vector<1x128xf32>
    %55 = vector.broadcast %54 : vector<1x128xf32> to vector<8x128xf32>
    %56 = arith.addf %53, %55 : vector<8x128xf32>
    %cst_26 = arith.constant 0.000000e+00 : f32
    %57 = vector.broadcast %cst_26 : f32 to vector<8x128xf32>
    %58 = arith.maximumf %56, %57 : vector<8x128xf32>
    %59 = arith.truncf %58 : vector<8x128xf32> to vector<8x128xbf16>
    %c0_27 = arith.constant 0 : index
    %c0_28 = arith.constant 0 : index
    %60 = vector.load %arg6[%c0_27, %c0_28] : memref<128x128xbf16, #tpu.memory_space<vmem>>, vector<128x128xbf16>
    %cst_29 = arith.constant dense<0.000000e+00> : vector<8x128xf32>
    %61 = tpu.matmul %59, %60, %cst_29 {dimension_numbers = #tpu.dot_dimension_numbers<[1], [0], [0], [1], [0, 0, 1, 1], [], []>} : vector<8x128xbf16>, vector<128x128xbf16>, vector<8x128xf32> -> vector<8x128xf32>
    %c5 = arith.constant 5 : index
    %c0_30 = arith.constant 0 : index
    %62 = vector.load %arg3[%c5, %c0_30] : memref<8x128xf32, #tpu.memory_space<vmem>>, vector<1x128xf32>
    %63 = vector.broadcast %62 : vector<1x128xf32> to vector<8x128xf32>
    %64 = arith.addf %61, %63 : vector<8x128xf32>
    %65 = vector.extract_strided_slice %64 {offsets = [0, 0], sizes = [8, 3], strides = [1, 1]} : vector<8x128xf32> to vector<8x3xf32>
    %c0_31 = arith.constant 0 : index
    %c0_32 = arith.constant 0 : index
    %66 = vector.load %arg7[%c0_31, %c0_32] : memref<8x3xf32, #tpu.memory_space<vmem>>, vector<8x3xf32>
    tpu.vector_store %arg7[%c0_31, %c0_32], %65 {strides = array<i32>} : memref<8x3xf32, #tpu.memory_space<vmem>>, vector<8x3xf32>,
    return
  }
  func.func @transform_0(%arg0: i32) -> (i32, i32) {
    %c0_i32 = arith.constant 0 : i32
    %c0_i32_0 = arith.constant 0 : i32
    return %arg0, %c0_i32 : i32, i32
  }
  func.func @transform_1(%arg0: i32) -> (i32, i32) {
    %c0_i32 = arith.constant 0 : i32
    %c0_i32_0 = arith.constant 0 : i32
    %c0_i32_1 = arith.constant 0 : i32
    return %c0_i32, %c0_i32_0 : i32, i32
  }
  func.func @transform_2(%arg0: i32) -> (i32, i32) {
    %c0_i32 = arith.constant 0 : i32
    %c0_i32_0 = arith.constant 0 : i32
    %c0_i32_1 = arith.constant 0 : i32
    return %c0_i32, %c0_i32_0 : i32, i32
  }
  func.func @transform_3(%arg0: i32) -> (i32, i32) {
    %c0_i32 = arith.constant 0 : i32
    %c0_i32_0 = arith.constant 0 : i32
    %c0_i32_1 = arith.constant 0 : i32
    return %c0_i32, %c0_i32_0 : i32, i32
  }
  func.func @transform_4(%arg0: i32) -> (i32, i32) {
    %c0_i32 = arith.constant 0 : i32
    %c0_i32_0 = arith.constant 0 : i32
    %c0_i32_1 = arith.constant 0 : i32
    return %c0_i32, %c0_i32_0 : i32, i32
  }
  func.func @transform_5(%arg0: i32) -> (i32, i32) {
    %c0_i32 = arith.constant 0 : i32
    %c0_i32_0 = arith.constant 0 : i32
    %c0_i32_1 = arith.constant 0 : i32
    return %c0_i32, %c0_i32_0 : i32, i32
  }
  func.func @transform_6(%arg0: i32) -> (i32, i32) {
    %c0_i32 = arith.constant 0 : i32
    %c0_i32_0 = arith.constant 0 : i32
    return %arg0, %c0_i32 : i32, i32
  }
}

</mosaic_0001>

<llo_original>
// kernel: tpu_custom_call.1
$region0: #{tpu_custom_call.1}
  #allocation0 [shape = 'u32[]', space=smem, size = 0x4, offset = 0x4, fixed_abs, tag = 'smem constant byte address 0x4 - core index']
  #allocation1 [shape = 'u32[144,128]{1,0:T(1,128)}', space=vmem, size = 0x12000, scoped, tag = 'internal scratch']
  %s0 = inlined_call_operand.hbm [shape: f32[8,8], index: 0, kind: input, shape index: {}]
  %s1 = inlined_call_operand.hbm [shape: bf16[8,48], index: 1, kind: input, shape index: {}]
  %s2 = inlined_call_operand.hbm [shape: f32[8,128], index: 2, kind: input, shape index: {}]
  %s3 = inlined_call_operand.hbm [shape: bf16[64,128], index: 3, kind: input, shape index: {}]
  %s4 = inlined_call_operand.hbm [shape: bf16[128,128], index: 4, kind: input, shape index: {}]
  %s5 = inlined_call_operand.hbm [shape: bf16[128,128], index: 5, kind: input, shape index: {}]
  %s6 = inlined_call_operand.vmem [shape: f32[8,3], index: 6, kind: output, shape index: {}]
  %s7 = sld [smem:[#allocation0]]
  $region58: #{tpu_custom_call.1} parent=0
    _
  %s9 = ssub.s32 1, %s7
  %s10 = scalar_select 0, %s9, %s7
  $region1: #{tpu_custom_call.1} parent=0
    #allocation2 [shape = 'u8[4096]{0}', space=vmem, size = 0x1000, scoped, tag = 'input window, operand 0, single buffered']
    #allocation3 [shape = 's32[1]{0}', space=sflag, size = 0x4, scoped, tag = 'scoped memory for tpu_custom_call.1']
    #allocation4 [shape = 'u8[2048]{0}', space=vmem, size = 0x800, scoped, tag = 'input window, operand 1, single buffered']
    #allocation5 [shape = 's32[1]{0}', space=sflag, size = 0x4, scoped, tag = 'scoped memory for tpu_custom_call.1']
    #allocation6 [shape = 'u8[4096]{0}', space=vmem, size = 0x1000, scoped, tag = 'input window, operand 2, single buffered']
    #allocation7 [shape = 'u8[16384]{0}', space=vmem, size = 0x4000, scoped, tag = 'input window, operand 3, single buffered']
    #allocation8 [shape = 's32[1]{0}', space=sflag, size = 0x4, scoped, tag = 'scoped memory for tpu_custom_call.1']
    #allocation9 [shape = 'u8[32768]{0}', space=vmem, size = 0x8000, scoped, tag = 'input window, operand 4, single buffered']
    #allocation10 [shape = 'u8[32768]{0}', space=vmem, size = 0x8000, scoped, tag = 'input window, operand 5, single buffered']
    #allocation11 [shape = 's32[1]{0}', space=sflag, size = 0x4, scoped, tag = 'scoped memory for tpu_custom_call.1']
    %11 = vsyncpa [#allocation3], 0
    %12 = vsyncpa [#allocation5], 0
    %13 = vsyncpa [#allocation8], 0
    %14 = vsyncpa [#allocation11], 0
    // Predicated region
    $region2: #{tpu_custom_call.1} parent=1 // pred_check
      _
    $region3: #{tpu_custom_call.1} parent=1 // pred_check_branch
      %16 = sbr.rel (0) target = $region5
    $region4: #{tpu_custom_call.1} parent=1 // pred_region
      %s18 = ssub.s32 128, 128
      %19 = vsyncadd [#allocation3], %s18
      %s21 = sshll.u32 [#allocation2], 4
      %s22 = int_to_ptr.vmem [resolvable:$true] %s21
      %24 = dma.hbm_to_vmem [thread:$0]  %s0, 128, %s22, [#allocation3]
    $region5: #{tpu_custom_call.1} parent=1 // pred_fallthru
      _
    // Predicated region
    $region6: #{tpu_custom_call.1} parent=1 // pred_check
      _
    $region7: #{tpu_custom_call.1} parent=1 // pred_check_branch
      %26 = sbr.rel (0) target = $region9
    $region8: #{tpu_custom_call.1} parent=1 // pred_region
      %s28 = ssub.s32 64, 64
      %29 = vsyncadd [#allocation5], %s28
      %s31 = sshll.u32 [#allocation4], 4
      %s32 = int_to_ptr.vmem [resolvable:$true] %s31
      %34 = dma.hbm_to_vmem [thread:$0]  %s1, 64, %s32, [#allocation5]
    $region9: #{tpu_custom_call.1} parent=1 // pred_fallthru
      _
    // Predicated region
    $region10: #{tpu_custom_call.1} parent=1 // pred_check
      _
    $region11: #{tpu_custom_call.1} parent=1 // pred_check_branch
      %36 = sbr.rel (0) target = $region13
    $region12: #{tpu_custom_call.1} parent=1 // pred_region
      %s38 = ssub.s32 128, 128
      %39 = vsyncadd [#allocation5], %s38
      %s41 = sshll.u32 [#allocation6], 4
      %s42 = int_to_ptr.vmem [resolvable:$true] %s41
      %44 = dma.hbm_to_vmem [thread:$0]  %s2, 128, %s42, [#allocation5]
    $region13: #{tpu_custom_call.1} parent=1 // pred_fallthru
      _
    // Predicated region
    $region14: #{tpu_custom_call.1} parent=1 // pred_check
      _
    $region15: #{tpu_custom_call.1} parent=1 // pred_check_branch
      %46 = sbr.rel (0) target = $region17
    $region16: #{tpu_custom_call.1} parent=1 // pred_region
      %s48 = ssub.s32 512, 512
      %49 = vsyncadd [#allocation8], %s48
      %s50 = sshll.u32 [#allocation7], 4
      %s51 = int_to_ptr.vmem [resolvable:$true] %s50
      %56 = dma.hbm_to_vmem [thread:$0]  %s3, 512, %s51, [#allocation8], 64, 64, 4
    $region17: #{tpu_custom_call.1} parent=1 // pred_fallthru
      _
    // Predicated region
    $region18: #{tpu_custom_call.1} parent=1 // pred_check
      _
    $region19: #{tpu_custom_call.1} parent=1 // pred_check_branch
      %58 = sbr.rel (0) target = $region21
    $region20: #{tpu_custom_call.1} parent=1 // pred_region
      %s60 = ssub.s32 1024, 1024
      %61 = vsyncadd [#allocation8], %s60
      %s62 = sshll.u32 [#allocation9], 4
      %s63 = int_to_ptr.vmem [resolvable:$true] %s62
      %68 = dma.hbm_to_vmem [thread:$0]  %s4, 1024, %s63, [#allocation8], 64, 64, 4
    $region21: #{tpu_custom_call.1} parent=1 // pred_fallthru
      _
    // Predicated region
    $region22: #{tpu_custom_call.1} parent=1 // pred_check
      _
    $region23: #{tpu_custom_call.1} parent=1 // pred_check_branch
      %70 = sbr.rel (0) target = $region25
    $region24: #{tpu_custom_call.1} parent=1 // pred_region
      %s72 = ssub.s32 1024, 1024
      %73 = vsyncadd [#allocation11], %s72
      %s74 = sshll.u32 [#allocation10], 4
      %s75 = int_to_ptr.vmem [resolvable:$true] %s74
      %80 = dma.hbm_to_vmem [thread:$0]  %s5, 1024, %s75, [#allocation11], 64, 64, 4
    $region25: #{tpu_custom_call.1} parent=1 // pred_fallthru
      _
    // Predicated region
    $region26: #{tpu_custom_call.1} parent=1 // pred_check
      _
    $region27: #{tpu_custom_call.1} parent=1 // pred_check_branch
      %82 = sbr.rel (0) target = $region29
    $region28: #{tpu_custom_call.1} parent=1 // pred_region
      %83 = dma.done [#allocation3], 128
    $region29: #{tpu_custom_call.1} parent=1 // pred_fallthru
      _
    // Predicated region
    $region30: #{tpu_custom_call.1} parent=1 // pred_check
      _
    $region31: #{tpu_custom_call.1} parent=1 // pred_check_branch
      %85 = sbr.rel (0) target = $region33
    $region32: #{tpu_custom_call.1} parent=1 // pred_region
      %86 = dma.done [#allocation5], 64
    $region33: #{tpu_custom_call.1} parent=1 // pred_fallthru
      _
    // Predicated region
    $region34: #{tpu_custom_call.1} parent=1 // pred_check
      _
    $region35: #{tpu_custom_call.1} parent=1 // pred_check_branch
      %88 = sbr.rel (0) target = $region37
    $region36: #{tpu_custom_call.1} parent=1 // pred_region
      %89 = dma.done [#allocation5], 128
    $region37: #{tpu_custom_call.1} parent=1 // pred_fallthru
      _
    // Predicated region
    $region38: #{tpu_custom_call.1} parent=1 // pred_check
      _
    $region39: #{tpu_custom_call.1} parent=1 // pred_check_branch
      %91 = sbr.rel (0) target = $region41
    $region40: #{tpu_custom_call.1} parent=1 // pred_region
      %92 = dma.done [#allocation8], 512
    $region41: #{tpu_custom_call.1} parent=1 // pred_fallthru
      _
    // Predicated region
    $region42: #{tpu_custom_call.1} parent=1 // pred_check
      _
    $region43: #{tpu_custom_call.1} parent=1 // pred_check_branch
      %94 = sbr.rel (0) target = $region45
    $region44: #{tpu_custom_call.1} parent=1 // pred_region
      %95 = dma.done [#allocation8], 1024
    $region45: #{tpu_custom_call.1} parent=1 // pred_fallthru
      _
    // Predicated region
    $region46: #{tpu_custom_call.1} parent=1 // pred_check
      _
    $region47: #{tpu_custom_call.1} parent=1 // pred_check_branch
      %97 = sbr.rel (0) target = $region49
    $region48: #{tpu_custom_call.1} parent=1 // pred_region
      %98 = dma.done [#allocation11], 1024
    $region49: #{tpu_custom_call.1} parent=1 // pred_fallthru
      _
    %v100 = vld [vmem:[#allocation2] sm:$0xff]
    %v101 = vpack.c.bf16 %v100, %v100
    %v102 = vld [vmem:[#allocation4] sm:$0xf]
    %vm103 = vcmask 64512
    %v105 = vsel %vm103, %v101, 0
    %vm107 = vcmask 1043456
    %v109 = vsel %vm107, %v102, 0
    %111 = vmatprep.subr.bf16.mxu0 0
    %112 = vmatpush1.bf16.msra.mxu0 %v109
    %113 = vmatprep.subr.bf16.mxu0 0
    %114 = vmatpush1.bf16.msra.mxu0 0
    %115 = vmatprep.subr.bf16.mxu0 0
    %116 = vmatpush1.bf16.msra.mxu0 0
    %117 = vmatprep.subr.bf16.mxu0 0
    %118 = vmatpush1.bf16.msra.mxu0 0
    %119 = vmatprep.subr.bf16.mxu0 0
    %120 = vmatpush1.bf16.msra.mxu0 0
    %121 = vmatprep.subr.bf16.mxu0 0
    %122 = vmatpush1.bf16.msra.mxu0 0
    %123 = vmatprep.subr.bf16.mxu0 0
    %124 = vmatpush1.bf16.msra.mxu0 0
    %125 = vmatprep.subr.bf16.mxu0 0
    %126 = vmatpush1.bf16.msra.mxu0 0
    %127 = vmatprep.subr.bf16.mxu0 0
    %128 = vmatpush1.bf16.msra.mxu0 0
    %129 = vmatprep.subr.bf16.mxu0 0
    %130 = vmatpush1.bf16.msra.mxu0 0
    %131 = vmatprep.subr.bf16.mxu0 0
    %132 = vmatpush1.bf16.msra.mxu0 0
    %133 = vmatprep.subr.bf16.mxu0 0
    %134 = vmatpush1.bf16.msra.mxu0 0
    %135 = vmatprep.subr.bf16.mxu0 0
    %136 = vmatpush1.bf16.msra.mxu0 0
    %137 = vmatprep.subr.bf16.mxu0 0
    %138 = vmatpush1.bf16.msra.mxu0 0
    %139 = vmatprep.subr.bf16.mxu0 0
    %140 = vmatpush1.bf16.msra.mxu0 0
    %141 = vmatprep.subr.bf16.mxu0 0
    %142 = vmatpush1.bf16.msra.mxu0 0
    %143 = vmatprep.mubr.bf16.mxu0 0
    %144 = vmatmul.mubr.bf16.gmra.mrb[0].mxu0 %v105
    %v145 = vpop.f32.mrb[0].mxu0
    %v146 = vadd.f32 0.0, %v145
    %v147 = vpop.f32.mrb[0].mxu0
    %v148 = vpop.f32.mrb[0].mxu0
    %v149 = vpop.f32.mrb[0].mxu0
    %150 = vdwg.mxu0
    %v151 = vld [vmem:[#allocation6] sm:$0x1]
    %v152 = vlaneseq
    %v153 = vshrl.u32 %v152, 7
    %v154 = vsub.s32 0, %v153
    %v155 = vrot.slane %v151, %v154
    %v156 = vadd.f32 %v146, %v155
    %vm157 = vcmask 261120
    %v158 = vsel %vm157, %v156, 0.0
    %159 = vadd.xlane.f32.xlu0 %v158
    %v160 = vpop.xlane.xlu0 %159
    %v161 = vrcp.pop 32.0
    %v162 = vmul.f32 %v160, %v161
    %v163 = vsub.f32 %v156, %v162
    %v164 = vmul.f32 %v163, %v163
    %v165 = vsel %vm157, %v164, 0.0
    %166 = vadd.xlane.f32.xlu0 %v165
    %v167 = vpop.xlane.xlu0 %166
    %v168 = vmul.f32 %v167, %v161
    %v169 = vadd.f32 %v168, 1e-05
    %v170 = vrsqrt.pop %v169
    %v171 = vmul.f32 %v163, %v170
    %v172 = vld [vmem:[#allocation6 + $0x1] sm:$0x1]
    %v173 = vlaneseq
    %v174 = vshrl.u32 %v173, 7
    %v175 = vsub.s32 0, %v174
    %v176 = vrot.slane %v172, %v175
    %v177 = vmul.f32 %v171, %v176
    %v178 = vld [vmem:[#allocation6 + $0x2] sm:$0x1]
    %v179 = vlaneseq
    %v180 = vshrl.u32 %v179, 7
    %v181 = vsub.s32 0, %v180
    %v182 = vrot.slane %v178, %v181
    %v183 = vadd.f32 %v177, %v182
    %v184 = vmax.f32 %v183, 0.0
    %v185 = vand.u32 2147483647, %v146
    %vm186 = vcmp.le.f32.partialorder %v185, 0.7853982
    %vm187 = vcmp.lt.s32.totalorder %v146, 0
    %v188 = vand.u32 %v146, 2139095040
    %v189 = vshrl.u32 %v188, 23
    %v190 = vsub.s32 %v189, 127
    %v191 = vand.u32 2147483647, %v146
    %v192 = vand.u32 %v191, 8388607
    %v193 = vor.u32 %v192, 8388608
    %v194 = vsub.s32 0, %v193
    %v195 = vadd.s32 %v190, 1
    %vm196 = vcmp.gt.s32.totalorder %v195, 0
    %v197 = vsel %vm196, %v195, 0
    %v198 = vshrl.u32 %v197, 5
    %v199 = vand.u32 %v197, 31
    %v200 = vsub.s32 32, %v199
    %v201 = vshrl.u32 683565275, %v200
    %v202 = vshll.u32 683565275, %v199
    %v203 = vshrl.u32 2475754826, %v200
    %v204 = vor.u32 %v202, %v203
    %v205 = vshll.u32 2475754826, %v199
    %v206 = vshrl.u32 2131351028, %v200
    %v207 = vor.u32 %v205, %v206
    %v208 = vshll.u32 2131351028, %v199
    %v209 = vshrl.u32 2102212464, %v200
    %v210 = vor.u32 %v208, %v209
    %v211 = vshll.u32 2102212464, %v199
    %v212 = vshrl.u32 920167782, %v200
    %v213 = vor.u32 %v211, %v212
    %v214 = vshll.u32 920167782, %v199
    %v215 = vshrl.u32 1326507024, %v200
    %v216 = vor.u32 %v214, %v215
    %vm217 = vcmp.lt.s32.totalorder %v198, 1
    %vm218 = vcmp.lt.s32.totalorder %v198, 2
    %vm219 = vcmp.lt.s32.totalorder %v198, 3
    %vm220 = vcmp.lt.s32.totalorder %v198, 4
    %v221 = vsel %vm217, %v201, %v204
    %v222 = vsel %vm220, %v210, 2102212464
    %v223 = vsel %vm219, %v207, %v222
    %v224 = vsel %vm218, %v221, %v223
    %v225 = vsel %vm217, %v204, %v207
    %v226 = vsel %vm220, %v213, 920167782
    %v227 = vsel %vm219, %v210, %v226
    %v228 = vsel %vm218, %v225, %v227
    %v229 = vsel %vm217, %v207, %v210
    %v230 = vsel %vm220, %v216, 1326507024
    %v231 = vsel %vm219, %v213, %v230
    %v232 = vsel %vm218, %v229, %v231
    %v233 = vshll.u32 %v193, 8
    %v234 = vmul.u32.u64.compose %v233, %v232
    %v235 = vextract.low.u32 %v234
    %v236 = vextract.high.u32 %v234
    %v237 = vmul.u32.u64.compose %v233, %v228
    %v238 = vextract.low.u32 %v237
    %v239 = vextract.high.u32 %v237
    %v240 = vmul.u32 %v233, %v224
    %v241 = vadd.s32 %v236, %v238
    %vm242 = vc.u32 %v236, %v238
    %v243 = vadd.s32 %v239, 1
    %v244 = vsel %vm242, %v243, %v239
    %v245 = vadd.s32 %v240, %v244
    %v246 = vadd.s32 %v245, 536870912
    %v247 = vshrl.u32 %v246, 30
    %v248 = vshll.u32 %v247, 30
    %v249 = vsub.s32 %v245, %v248
    %vm250 = vcmp.lt.s32.totalorder %v249, 0
    %v251 = vsub.s32 0, %v249
    %v252 = vsel %vm250, %v251, %v249
    %v253 = vclz %v252
    %v254 = vsub.s32 %v253, 2
    %vm255 = vcmp.gt.s32.totalorder 0, %v254
    %v256 = vsel %vm255, 0, %v254
    %v257 = vsub.s32 32, %v256
    %v258 = vshll.u32 %v249, %v256
    %v259 = vshrl.u32 %v241, %v257
    %v260 = vor.u32 %v258, %v259
    %v261 = vsub.s32 4294967266, %v256
    %v262 = vadd.s32 %v261, 127
    %v263 = vshll.u32 %v262, 23
    %v264 = vor.u32 4788187, %v263
    %v265 = vand.u32 2147483647, %v264
    %v267 = vcvt.s32.f32 %v260
    %v268 = vmul.f32 %v267, %v265
    %v269 = vxor.u32 %v268, 2147483648
    %v270 = vsel %vm187, %v269, %v268
    %v271 = vsub.s32 4, %v247
    %v272 = vsel %vm187, %v271, %v247
    %v273 = vsel %vm186, %v146, %v270
    %v274 = vsel %vm186, 0, %v272
    %v275 = vcosq.f32.pop %v273
    %v276 = vsinq.f32.pop %v273
    %vm277 = vweird.f32 %v146
    %v278 = vadd.s32 %v274, 3
    %v279 = vand.u32 %v278, 3
    %vm280 = vcmp.lt.s32.totalorder %v279, 2
    %vm281 = vcmp.eq.s32.totalorder %v279, 0
    %v282 = vxor.u32 %v276, 2147483648
    %v283 = vsel %vm281, %v275, %v282
    %vm284 = vcmp.eq.s32.totalorder %v279, 2
    %v285 = vxor.u32 %v275, 2147483648
    %v286 = vsel %vm284, %v285, %v276
    %v287 = vsel %vm280, %v283, %v286
    %v288 = vsel %vm277, nan, %v287
    %v289 = vand.u32 2147483647, %v146
    %vm290 = vcmp.le.f32.partialorder %v289, 0.7853982
    %vm291 = vcmp.lt.s32.totalorder %v146, 0
    %v292 = vand.u32 %v146, 2139095040
    %v293 = vshrl.u32 %v292, 23
    %v294 = vsub.s32 %v293, 127
    %v295 = vand.u32 2147483647, %v146
    %v296 = vand.u32 %v295, 8388607
    %v297 = vor.u32 %v296, 8388608
    %v298 = vsub.s32 0, %v297
    %v299 = vadd.s32 %v294, 1
    %vm300 = vcmp.gt.s32.totalorder %v299, 0
    %v301 = vsel %vm300, %v299, 0
    %v302 = vshrl.u32 %v301, 5
    %v303 = vand.u32 %v301, 31
    %v304 = vsub.s32 32, %v303
    %v305 = vshrl.u32 683565275, %v304
    %v306 = vshll.u32 683565275, %v303
    %v307 = vshrl.u32 2475754826, %v304
    %v308 = vor.u32 %v306, %v307
    %v309 = vshll.u32 2475754826, %v303
    %v310 = vshrl.u32 2131351028, %v304
    %v311 = vor.u32 %v309, %v310
    %v312 = vshll.u32 2131351028, %v303
    %v313 = vshrl.u32 2102212464, %v304
    %v314 = vor.u32 %v312, %v313
    %v315 = vshll.u32 2102212464, %v303
    %v316 = vshrl.u32 920167782, %v304
    %v317 = vor.u32 %v315, %v316
    %v318 = vshll.u32 920167782, %v303
    %v319 = vshrl.u32 1326507024, %v304
    %v320 = vor.u32 %v318, %v319
    %vm321 = vcmp.lt.s32.totalorder %v302, 1
    %vm322 = vcmp.lt.s32.totalorder %v302, 2
    %vm323 = vcmp.lt.s32.totalorder %v302, 3
    %vm324 = vcmp.lt.s32.totalorder %v302, 4
    %v325 = vsel %vm321, %v305, %v308
    %v326 = vsel %vm324, %v314, 2102212464
    %v327 = vsel %vm323, %v311, %v326
    %v328 = vsel %vm322, %v325, %v327
    %v329 = vsel %vm321, %v308, %v311
    %v330 = vsel %vm324, %v317, 920167782
    %v331 = vsel %vm323, %v314, %v330
    %v332 = vsel %vm322, %v329, %v331
    %v333 = vsel %vm321, %v311, %v314
    %v334 = vsel %vm324, %v320, 1326507024
    %v335 = vsel %vm323, %v317, %v334
    %v336 = vsel %vm322, %v333, %v335
    %v337 = vshll.u32 %v297, 8
    %v338 = vmul.u32.u64.compose %v337, %v336
    %v339 = vextract.low.u32 %v338
    %v340 = vextract.high.u32 %v338
    %v341 = vmul.u32.u64.compose %v337, %v332
    %v342 = vextract.low.u32 %v341
    %v343 = vextract.high.u32 %v341
    %v344 = vmul.u32 %v337, %v328
    %v345 = vadd.s32 %v340, %v342
    %vm346 = vc.u32 %v340, %v342
    %v347 = vadd.s32 %v343, 1
    %v348 = vsel %vm346, %v347, %v343
    %v349 = vadd.s32 %v344, %v348
    %v350 = vadd.s32 %v349, 536870912
    %v351 = vshrl.u32 %v350, 30
    %v352 = vshll.u32 %v351, 30
    %v353 = vsub.s32 %v349, %v352
    %vm354 = vcmp.lt.s32.totalorder %v353, 0
    %v355 = vsub.s32 0, %v353
    %v356 = vsel %vm354, %v355, %v353
    %v357 = vclz %v356
    %v358 = vsub.s32 %v357, 2
    %vm359 = vcmp.gt.s32.totalorder 0, %v358
    %v360 = vsel %vm359, 0, %v358
    %v361 = vsub.s32 32, %v360
    %v362 = vshll.u32 %v353, %v360
    %v363 = vshrl.u32 %v345, %v361
    %v364 = vor.u32 %v362, %v363
    %v365 = vsub.s32 4294967266, %v360
    %v366 = vadd.s32 %v365, 127
    %v367 = vshll.u32 %v366, 23
    %v368 = vor.u32 4788187, %v367
    %v369 = vand.u32 2147483647, %v368
    %v371 = vcvt.s32.f32 %v364
    %v372 = vmul.f32 %v371, %v369
    %v373 = vxor.u32 %v372, 2147483648
    %v374 = vsel %vm291, %v373, %v372
    %v375 = vsub.s32 4, %v351
    %v376 = vsel %vm291, %v375, %v351
    %v377 = vsel %vm290, %v146, %v374
    %v378 = vsel %vm290, 0, %v376
    %v379 = vcosq.f32.pop %v377
    %v380 = vsinq.f32.pop %v377
    %vm381 = vweird.f32 %v146
    %v382 = vand.u32 %v378, 3
    %vm383 = vcmp.lt.s32.totalorder %v382, 2
    %vm384 = vcmp.eq.s32.totalorder %v382, 0
    %v385 = vxor.u32 %v380, 2147483648
    %v386 = vsel %vm384, %v379, %v385
    %vm387 = vcmp.eq.s32.totalorder %v382, 2
    %v388 = vxor.u32 %v379, 2147483648
    %v389 = vsel %vm387, %v388, %v380
    %v390 = vsel %vm383, %v386, %v389
    %v391 = vsel %vm381, nan, %v390
    %v392 = vpack.c.bf16 %v184, %v184
    %v393 = vld [vmem:[#allocation7] sm:$0xf]
    %v394 = vld [vmem:[#allocation7 + $0x4] sm:$0xf]
    %v395 = vld [vmem:[#allocation7 + $0x8] sm:$0xf]
    %v396 = vld [vmem:[#allocation7 + $0xc] sm:$0xf]
    %v397 = vpack.c.bf16 %v288, %v288
    %v398 = vld [vmem:[#allocation7 + $0x10] sm:$0xf]
    %v399 = vld [vmem:[#allocation7 + $0x14] sm:$0xf]
    %401 = vrot.lane.b32.xlu0 %v397, 96
    %v402 = vpop.permute.xlu0 %401
    %v405 = vunpack.c.l.b16 %v398
    %v406 = vunpack.c.l.b16 %v399
    %v407 = vpack.c.b16 %v406, %v405
    %vm409 = vcmask 130048
    %v411 = vsel %vm409, %v402, 0
    %413 = vmatprep.subr.bf16.mxu0 0
    %414 = vmatpush1.bf16.msra.mxu0 %v407
    %415 = vmatprep.subr.bf16.mxu0 0
    %416 = vmatpush1.bf16.msra.mxu0 0
    %417 = vmatprep.subr.bf16.mxu0 0
    %418 = vmatpush1.bf16.msra.mxu0 0
    %419 = vmatprep.subr.bf16.mxu0 0
    %420 = vmatpush1.bf16.msra.mxu0 0
    %421 = vmatprep.subr.bf16.mxu0 0
    %422 = vmatpush1.bf16.msra.mxu0 0
    %423 = vmatprep.subr.bf16.mxu0 0
    %424 = vmatpush1.bf16.msra.mxu0 0
    %425 = vmatprep.subr.bf16.mxu0 0
    %426 = vmatpush1.bf16.msra.mxu0 0
    %427 = vmatprep.subr.bf16.mxu0 0
    %428 = vmatpush1.bf16.msra.mxu0 0
    %429 = vmatprep.subr.bf16.mxu0 0
    %430 = vmatpush1.bf16.msra.mxu0 0
    %431 = vmatprep.subr.bf16.mxu0 0
    %432 = vmatpush1.bf16.msra.mxu0 0
    %433 = vmatprep.subr.bf16.mxu0 0
    %434 = vmatpush1.bf16.msra.mxu0 0
    %435 = vmatprep.subr.bf16.mxu0 0
    %436 = vmatpush1.bf16.msra.mxu0 0
    %437 = vmatprep.subr.bf16.mxu0 0
    %438 = vmatpush1.bf16.msra.mxu0 0
    %439 = vmatprep.subr.bf16.mxu0 0
    %440 = vmatpush1.bf16.msra.mxu0 0
    %441 = vmatprep.subr.bf16.mxu0 0
    %442 = vmatpush1.bf16.msra.mxu0 0
    %443 = vmatprep.subr.bf16.mxu0 0
    %444 = vmatpush1.bf16.msra.mxu0 0
    %445 = vmatprep.mubr.bf16.mxu0 0
    %446 = vmatmul.mubr.bf16.gmra.mrb[0].mxu0 %v411
    %v447 = vpop.f32.mrb[0].mxu0
    %v448 = vadd.f32 0.0, %v447
    %v449 = vpop.f32.mrb[0].mxu0
    %v450 = vpop.f32.mrb[0].mxu0
    %v451 = vpop.f32.mrb[0].mxu0
    %452 = vdwg.mxu0
    %v457 = vunpack.c.l.b16 %v393
    %v458 = vunpack.c.l.b16 %v394
    %v459 = vunpack.c.l.b16 %v395
    %v460 = vunpack.c.l.b16 %v396
    %v461 = vpack.c.b16 %v458, %v457
    %v462 = vpack.c.b16 %v460, %v459
    %v466 = vsel %vm157, %v392, 0
    %468 = vmatprep.subr.bf16.mxu0 0
    %469 = vmatpush1.bf16.msra.mxu0 %v461
    %470 = vmatprep.subr.bf16.mxu0 0
    %471 = vmatpush1.bf16.msra.mxu0 %v462
    %472 = vmatprep.subr.bf16.mxu0 0
    %473 = vmatpush1.bf16.msra.mxu0 0
    %474 = vmatprep.subr.bf16.mxu0 0
    %475 = vmatpush1.bf16.msra.mxu0 0
    %476 = vmatprep.subr.bf16.mxu0 0
    %477 = vmatpush1.bf16.msra.mxu0 0
    %478 = vmatprep.subr.bf16.mxu0 0
    %479 = vmatpush1.bf16.msra.mxu0 0
    %480 = vmatprep.subr.bf16.mxu0 0
    %481 = vmatpush1.bf16.msra.mxu0 0
    %482 = vmatprep.subr.bf16.mxu0 0
    %483 = vmatpush1.bf16.msra.mxu0 0
    %484 = vmatprep.subr.bf16.mxu0 0
    %485 = vmatpush1.bf16.msra.mxu0 0
    %486 = vmatprep.subr.bf16.mxu0 0
    %487 = vmatpush1.bf16.msra.mxu0 0
    %488 = vmatprep.subr.bf16.mxu0 0
    %489 = vmatpush1.bf16.msra.mxu0 0
    %490 = vmatprep.subr.bf16.mxu0 0
    %491 = vmatpush1.bf16.msra.mxu0 0
    %492 = vmatprep.subr.bf16.mxu0 0
    %493 = vmatpush1.bf16.msra.mxu0 0
    %494 = vmatprep.subr.bf16.mxu0 0
    %495 = vmatpush1.bf16.msra.mxu0 0
    %496 = vmatprep.subr.bf16.mxu0 0
    %497 = vmatpush1.bf16.msra.mxu0 0
    %498 = vmatprep.subr.bf16.mxu0 0
    %499 = vmatpush1.bf16.msra.mxu0 0
    %500 = vmatprep.mubr.bf16.mxu0 0
    %501 = vmatmul.mubr.bf16.gmra.mrb[0].mxu0 %v466
    %v502 = vpop.f32.mrb[0].mxu0
    %v503 = vadd.f32 %v448, %v502
    %v504 = vpop.f32.mrb[0].mxu0
    %v505 = vpop.f32.mrb[0].mxu0
    %v506 = vpop.f32.mrb[0].mxu0
    %507 = vdwg.mxu0
    %v508 = vpack.c.bf16 %v391, %v391
    %v509 = vld [vmem:[#allocation7 + $0x18] sm:$0xf]
    %v510 = vld [vmem:[#allocation7 + $0x1c] sm:$0xf]
    %512 = vrot.lane.b32.xlu0 %v508, 96
    %v513 = vpop.permute.xlu0 %512
    %v516 = vunpack.c.l.b16 %v509
    %v517 = vunpack.c.l.b16 %v510
    %v518 = vpack.c.b16 %v517, %v516
    %v521 = vsel %vm409, %v513, 0
    %523 = vmatprep.subr.bf16.mxu0 0
    %524 = vmatpush1.bf16.msra.mxu0 %v518
    %525 = vmatprep.subr.bf16.mxu0 0
    %526 = vmatpush1.bf16.msra.mxu0 0
    %527 = vmatprep.subr.bf16.mxu0 0
    %528 = vmatpush1.bf16.msra.mxu0 0
    %529 = vmatprep.subr.bf16.mxu0 0
    %530 = vmatpush1.bf16.msra.mxu0 0
    %531 = vmatprep.subr.bf16.mxu0 0
    %532 = vmatpush1.bf16.msra.mxu0 0
    %533 = vmatprep.subr.bf16.mxu0 0
    %534 = vmatpush1.bf16.msra.mxu0 0
    %535 = vmatprep.subr.bf16.mxu0 0
    %536 = vmatpush1.bf16.msra.mxu0 0
    %537 = vmatprep.subr.bf16.mxu0 0
    %538 = vmatpush1.bf16.msra.mxu0 0
    %539 = vmatprep.subr.bf16.mxu0 0
    %540 = vmatpush1.bf16.msra.mxu0 0
    %541 = vmatprep.subr.bf16.mxu0 0
    %542 = vmatpush1.bf16.msra.mxu0 0
    %543 = vmatprep.subr.bf16.mxu0 0
    %544 = vmatpush1.bf16.msra.mxu0 0
    %545 = vmatprep.subr.bf16.mxu0 0
    %546 = vmatpush1.bf16.msra.mxu0 0
    %547 = vmatprep.subr.bf16.mxu0 0
    %548 = vmatpush1.bf16.msra.mxu0 0
    %549 = vmatprep.subr.bf16.mxu0 0
    %550 = vmatpush1.bf16.msra.mxu0 0
    %551 = vmatprep.subr.bf16.mxu0 0
    %552 = vmatpush1.bf16.msra.mxu0 0
    %553 = vmatprep.subr.bf16.mxu0 0
    %554 = vmatpush1.bf16.msra.mxu0 0
    %555 = vmatprep.mubr.bf16.mxu0 0
    %556 = vmatmul.mubr.bf16.gmra.mrb[0].mxu0 %v521
    %v557 = vpop.f32.mrb[0].mxu0
    %v558 = vadd.f32 0.0, %v557
    %v559 = vpop.f32.mrb[0].mxu0
    %v560 = vpop.f32.mrb[0].mxu0
    %v561 = vpop.f32.mrb[0].mxu0
    %562 = vdwg.mxu0
    %v563 = vadd.f32 %v503, %v558
    %v564 = vld [vmem:[#allocation6 + $0x3] sm:$0x1]
    %v565 = vlaneseq
    %v566 = vshrl.u32 %v565, 7
    %v567 = vsub.s32 0, %v566
    %v568 = vrot.slane %v564, %v567
    %v569 = vadd.f32 %v563, %v568
    %v570 = vmax.f32 %v569, 0.0
    %v571 = vpack.c.bf16 %v570, %v570
    %v572 = vld [vmem:[#allocation9] sm:$0xf]
    %v573 = vld [vmem:[#allocation9 + $0x4] sm:$0xf]
    %v574 = vld [vmem:[#allocation9 + $0x8] sm:$0xf]
    %v575 = vld [vmem:[#allocation9 + $0xc] sm:$0xf]
    %v576 = vld [vmem:[#allocation9 + $0x10] sm:$0xf]
    %v577 = vld [vmem:[#allocation9 + $0x14] sm:$0xf]
    %v578 = vld [vmem:[#allocation9 + $0x18] sm:$0xf]
    %v579 = vld [vmem:[#allocation9 + $0x1c] sm:$0xf]
    %v580 = vld [vmem:[#allocation9 + $0x20] sm:$0xf]
    %v581 = vld [vmem:[#allocation9 + $0x24] sm:$0xf]
    %v582 = vld [vmem:[#allocation9 + $0x28] sm:$0xf]
    %v583 = vld [vmem:[#allocation9 + $0x2c] sm:$0xf]
    %v584 = vld [vmem:[#allocation9 + $0x30] sm:$0xf]
    %v585 = vld [vmem:[#allocation9 + $0x34] sm:$0xf]
    %v586 = vld [vmem:[#allocation9 + $0x38] sm:$0xf]
    %v587 = vld [vmem:[#allocation9 + $0x3c] sm:$0xf]
    %v588 = vld [vmem:[#allocation6 + $0x4] sm:$0x1]
    %v589 = vlaneseq
    %v590 = vshrl.u32 %v589, 7
    %v591 = vsub.s32 0, %v590
    %v592 = vrot.slane %v588, %v591
    %v609 = vunpack.c.l.b16 %v572
    %v610 = vunpack.c.l.b16 %v573
    %v611 = vunpack.c.l.b16 %v574
    %v612 = vunpack.c.l.b16 %v575
    %v613 = vunpack.c.l.b16 %v576
    %v614 = vunpack.c.l.b16 %v577
    %v615 = vunpack.c.l.b16 %v578
    %v616 = vunpack.c.l.b16 %v579
    %v617 = vunpack.c.l.b16 %v580
    %v618 = vunpack.c.l.b16 %v581
    %v619 = vunpack.c.l.b16 %v582
    %v620 = vunpack.c.l.b16 %v583
    %v621 = vunpack.c.l.b16 %v584
    %v622 = vunpack.c.l.b16 %v585
    %v623 = vunpack.c.l.b16 %v586
    %v624 = vunpack.c.l.b16 %v587
    %v625 = vpack.c.b16 %v610, %v609
    %v626 = vpack.c.b16 %v612, %v611
    %v627 = vpack.c.b16 %v614, %v613
    %v628 = vpack.c.b16 %v616, %v615
    %v629 = vpack.c.b16 %v618, %v617
    %v630 = vpack.c.b16 %v620, %v619
    %v631 = vpack.c.b16 %v622, %v621
    %v632 = vpack.c.b16 %v624, %v623
    %641 = vmatprep.subr.bf16.mxu0 0
    %642 = vmatpush1.bf16.msra.mxu0 %v625
    %643 = vmatprep.subr.bf16.mxu0 0
    %644 = vmatpush1.bf16.msra.mxu0 %v626
    %645 = vmatprep.subr.bf16.mxu0 0
    %646 = vmatpush1.bf16.msra.mxu0 %v627
    %647 = vmatprep.subr.bf16.mxu0 0
    %648 = vmatpush1.bf16.msra.mxu0 %v628
    %649 = vmatprep.subr.bf16.mxu0 0
    %650 = vmatpush1.bf16.msra.mxu0 %v629
    %651 = vmatprep.subr.bf16.mxu0 0
    %652 = vmatpush1.bf16.msra.mxu0 %v630
    %653 = vmatprep.subr.bf16.mxu0 0
    %654 = vmatpush1.bf16.msra.mxu0 %v631
    %655 = vmatprep.subr.bf16.mxu0 0
    %656 = vmatpush1.bf16.msra.mxu0 %v632
    %657 = vmatprep.subr.bf16.mxu0 0
    %658 = vmatpush1.bf16.msra.mxu0 0
    %659 = vmatprep.subr.bf16.mxu0 0
    %660 = vmatpush1.bf16.msra.mxu0 0
    %661 = vmatprep.subr.bf16.mxu0 0
    %662 = vmatpush1.bf16.msra.mxu0 0
    %663 = vmatprep.subr.bf16.mxu0 0
    %664 = vmatpush1.bf16.msra.mxu0 0
    %665 = vmatprep.subr.bf16.mxu0 0
    %666 = vmatpush1.bf16.msra.mxu0 0
    %667 = vmatprep.subr.bf16.mxu0 0
    %668 = vmatpush1.bf16.msra.mxu0 0
    %669 = vmatprep.subr.bf16.mxu0 0
    %670 = vmatpush1.bf16.msra.mxu0 0
    %671 = vmatprep.subr.bf16.mxu0 0
    %672 = vmatpush1.bf16.msra.mxu0 0
    %673 = vmatprep.mubr.bf16.mxu0 0
    %674 = vmatmul.mubr.bf16.gmra.mrb[0].mxu0 %v571
    %v675 = vpop.f32.mrb[0].mxu0
    %v676 = vadd.f32 %v592, %v675
    %v677 = vpop.f32.mrb[0].mxu0
    %v678 = vpop.f32.mrb[0].mxu0
    %v679 = vpop.f32.mrb[0].mxu0
    %680 = vdwg.mxu0
    %v681 = vmax.f32 %v676, 0.0
    %v682 = vpack.c.bf16 %v681, %v681
    %v683 = vld [vmem:[#allocation10] sm:$0xf]
    %v684 = vld [vmem:[#allocation10 + $0x4] sm:$0xf]
    %v685 = vld [vmem:[#allocation10 + $0x8] sm:$0xf]
    %v686 = vld [vmem:[#allocation10 + $0xc] sm:$0xf]
    %v687 = vld [vmem:[#allocation10 + $0x10] sm:$0xf]
    %v688 = vld [vmem:[#allocation10 + $0x14] sm:$0xf]
    %v689 = vld [vmem:[#allocation10 + $0x18] sm:$0xf]
    %v690 = vld [vmem:[#allocation10 + $0x1c] sm:$0xf]
    %v691 = vld [vmem:[#allocation10 + $0x20] sm:$0xf]
    %v692 = vld [vmem:[#allocation10 + $0x24] sm:$0xf]
    %v693 = vld [vmem:[#allocation10 + $0x28] sm:$0xf]
    %v694 = vld [vmem:[#allocation10 + $0x2c] sm:$0xf]
    %v695 = vld [vmem:[#allocation10 + $0x30] sm:$0xf]
    %v696 = vld [vmem:[#allocation10 + $0x34] sm:$0xf]
    %v697 = vld [vmem:[#allocation10 + $0x38] sm:$0xf]
    %v698 = vld [vmem:[#allocation10 + $0x3c] sm:$0xf]
    %v699 = vld [vmem:[#allocation6 + $0x5] sm:$0x1]
    %v700 = vlaneseq
    %v701 = vshrl.u32 %v700, 7
    %v702 = vsub.s32 0, %v701
    %v703 = vrot.slane %v699, %v702
    %v720 = vunpack.c.l.b16 %v683
    %v721 = vunpack.c.l.b16 %v684
    %v722 = vunpack.c.l.b16 %v685
    %v723 = vunpack.c.l.b16 %v686
    %v724 = vunpack.c.l.b16 %v687
    %v725 = vunpack.c.l.b16 %v688
    %v726 = vunpack.c.l.b16 %v689
    %v727 = vunpack.c.l.b16 %v690
    %v728 = vunpack.c.l.b16 %v691
    %v729 = vunpack.c.l.b16 %v692
    %v730 = vunpack.c.l.b16 %v693
    %v731 = vunpack.c.l.b16 %v694
    %v732 = vunpack.c.l.b16 %v695
    %v733 = vunpack.c.l.b16 %v696
    %v734 = vunpack.c.l.b16 %v697
    %v735 = vunpack.c.l.b16 %v698
    %v736 = vpack.c.b16 %v721, %v720
    %v737 = vpack.c.b16 %v723, %v722
    %v738 = vpack.c.b16 %v725, %v724
    %v739 = vpack.c.b16 %v727, %v726
    %v740 = vpack.c.b16 %v729, %v728
    %v741 = vpack.c.b16 %v731, %v730
    %v742 = vpack.c.b16 %v733, %v732
    %v743 = vpack.c.b16 %v735, %v734
    %752 = vmatprep.subr.bf16.mxu0 0
    %753 = vmatpush1.bf16.msra.mxu0 %v736
    %754 = vmatprep.subr.bf16.mxu0 0
    %755 = vmatpush1.bf16.msra.mxu0 %v737
    %756 = vmatprep.subr.bf16.mxu0 0
    %757 = vmatpush1.bf16.msra.mxu0 %v738
    %758 = vmatprep.subr.bf16.mxu0 0
    %759 = vmatpush1.bf16.msra.mxu0 %v739
    %760 = vmatprep.subr.bf16.mxu0 0
    %761 = vmatpush1.bf16.msra.mxu0 %v740
    %762 = vmatprep.subr.bf16.mxu0 0
    %763 = vmatpush1.bf16.msra.mxu0 %v741
    %764 = vmatprep.subr.bf16.mxu0 0
    %765 = vmatpush1.bf16.msra.mxu0 %v742
    %766 = vmatprep.subr.bf16.mxu0 0
    %767 = vmatpush1.bf16.msra.mxu0 %v743
    %768 = vmatprep.subr.bf16.mxu0 0
    %769 = vmatpush1.bf16.msra.mxu0 0
    %770 = vmatprep.subr.bf16.mxu0 0
    %771 = vmatpush1.bf16.msra.mxu0 0
    %772 = vmatprep.subr.bf16.mxu0 0
    %773 = vmatpush1.bf16.msra.mxu0 0
    %774 = vmatprep.subr.bf16.mxu0 0
    %775 = vmatpush1.bf16.msra.mxu0 0
    %776 = vmatprep.subr.bf16.mxu0 0
    %777 = vmatpush1.bf16.msra.mxu0 0
    %778 = vmatprep.subr.bf16.mxu0 0
    %779 = vmatpush1.bf16.msra.mxu0 0
    %780 = vmatprep.subr.bf16.mxu0 0
    %781 = vmatpush1.bf16.msra.mxu0 0
    %782 = vmatprep.subr.bf16.mxu0 0
    %783 = vmatpush1.bf16.msra.mxu0 0
    %784 = vmatprep.mubr.bf16.mxu0 0
    %785 = vmatmul.mubr.bf16.gmra.mrb[0].mxu0 %v682
    %v786 = vpop.f32.mrb[0].mxu0
    %v787 = vadd.f32 %v703, %v786
    %v788 = vpop.f32.mrb[0].mxu0
    %v789 = vpop.f32.mrb[0].mxu0
    %v790 = vpop.f32.mrb[0].mxu0
    %791 = vdwg.mxu0
    %vm792 = vcmask 23552
    %793 = vst.msk [vmem:[%s6] sm:$0xff] %vm792, %v787
    // Predicated region
    $region50: #{tpu_custom_call.1} parent=1 // pred_check
      _
    $region51: #{tpu_custom_call.1} parent=1 // pred_check_branch
      %795 = sbr.rel (0) target = $region53
    $region52: #{tpu_custom_call.1} parent=1 // pred_region
      _
    $region53: #{tpu_custom_call.1} parent=1 // pred_fallthru
      _
    // Predicated region
    $region54: #{tpu_custom_call.1} parent=1 // pred_check
      _
    $region55: #{tpu_custom_call.1} parent=1 // pred_check_branch
      %797 = sbr.rel (0) target = $region57
    $region56: #{tpu_custom_call.1} parent=1 // pred_region
      _
    $region57: #{tpu_custom_call.1} parent=1 // pred_fallthru
      _
    %798 = vsyncpa [#allocation3], 1
    %799 = vsyncpa [#allocation5], 1
    %800 = vsyncpa [#allocation8], 1
    %801 = vsyncpa [#allocation11], 1

</llo_original>
